<compile_context>
chip_gen: v5e
topology: v5e:2x2
jax: 0.10.0
libtpu: 0.0.40
codegen_flags: <defaults>
</compile_context>

<pallas_src>
import functools

import jax
import jax.numpy as jnp
from jax.experimental import pallas as pl
from jax.experimental.pallas import tpu as pltpu


def _round_up(x, m):
    return ((x + m - 1) // m) * m


def _mlp_kernel(x_ref, w1t_ref, b1_ref, w2t_ref, b2_ref, o_ref):
    """out = ELU(x @ W1^T + b1) @ W2^T_pad + b2_pad  (weights pre-transposed/padded)."""
    x = x_ref[...]

    # First linear layer (MXU matmul, f32 accumulate).
    h = jnp.dot(x, w1t_ref[...], preferred_element_type=jnp.float32)
    h = h + b1_ref[...]                      # b1 is [1, H], broadcasts over rows

    # ELU (alpha = 1.0): x if x > 0 else exp(x) - 1.
    # Clamp the exp argument so the unselected branch never produces inf
    # (exp runs on the EUP slot -> effectively free next to the MXU work).
    h = jnp.where(h > 0.0, h, jnp.exp(jnp.minimum(h, 0.0)) - 1.0)

    # Second linear layer into the lane-dense (128-multiple) padded output.
    out = jnp.dot(h, w2t_ref[...], preferred_element_type=jnp.float32)
    out = out + b2_ref[...]                  # b2 is [1, C_pad]

    o_ref[...] = out.astype(o_ref.dtype)


@functools.partial(jax.jit, static_argnames=("common_size", "block_rows"))
def fused_mlp_pallas(xs, w1t, b1r, w2t_pad, b2r_pad, *, common_size,
                     block_rows=512):
    """Apply the shared MLP to several [N_i, H] inputs with ONE pallas_call.

    xs:       tuple of [N_i, H] arrays (concatenated along rows).
    w1t:      [H, H]      pre-transposed W1
    b1r:      [1, H]
    w2t_pad:  [H, C_pad]  pre-transposed W2, zero-padded to a 128-lane multiple
    b2r_pad:  [1, C_pad]
    Returns a tuple of [N_i, common_size] outputs.
    """
    hidden = w1t.shape[0]
    c_pad = w2t_pad.shape[1]
    dtype = xs[0].dtype

    # Pad every input to a multiple of 8 rows (sublane) and concatenate.
    sizes = tuple(int(x.shape[0]) for x in xs)
    padded_sizes = tuple(_round_up(n, 8) for n in sizes)
    parts = []
    for x, n_pad in zip(xs, padded_sizes):
        n = x.shape[0]
        if n_pad > n:
            x = jnp.concatenate([x, jnp.zeros((n_pad - n, hidden), dtype)],
                                axis=0)
        parts.append(x)
    x_all = jnp.concatenate(parts, axis=0) if len(parts) > 1 else parts[0]
    n_total = x_all.shape[0]

    # Row tile: a real grid enables prefetch/compute/writeback pipelining and
    # megacore sharding on v7x; tiny inputs clamp to a single tile.
    br = min(block_rows, _round_up(n_total, 8))
    br = _round_up(br, 8)
    n_grid = _round_up(n_total, br)
    if n_grid > n_total:
        x_all = jnp.concatenate(
            [x_all, jnp.zeros((n_grid - n_total, hidden), dtype)], axis=0)
    grid = (n_grid // br,)

    out = pl.pallas_call(
        _mlp_kernel,
        out_shape=jax.ShapeDtypeStruct((n_grid, c_pad), dtype),
        grid_spec=pltpu.PrefetchScalarGridSpec(
            num_scalar_prefetch=0,
            grid=grid,
            in_specs=[
                pl.BlockSpec((br, hidden), lambda i: (i, 0)),      # x row tile
                pl.BlockSpec((hidden, hidden), lambda i: (0, 0)),  # W1^T (resident)
                pl.BlockSpec((1, hidden), lambda i: (0, 0)),       # b1
                pl.BlockSpec((hidden, c_pad), lambda i: (0, 0)),   # W2^T padded
                pl.BlockSpec((1, c_pad), lambda i: (0, 0)),        # b2 padded
            ],
            out_specs=pl.BlockSpec((br, c_pad), lambda i: (i, 0)),  # lane-dense
        ),
        compiler_params=pltpu.CompilerParams(
            dimension_semantics=("parallel",)),
    )(x_all, w1t, b1r, w2t_pad, b2r_pad)

    # Split back per source and drop row/lane padding (cheap XLA slices).
    outs = []
    off = 0
    for n, n_pad in zip(sizes, padded_sizes):
        outs.append(out[off:off + n, :common_size])
        off += n_pad
    return tuple(outs)


class MappingPallas:
    """JAX/Pallas port of the `Mapping` module (forward hot path: the MLP)."""

    def __init__(self, hidden_dim, common_size, ds_nums, se_nums, key):
        k_ds, k_se, k_w1, k_w2 = jax.random.split(key, 4)

        self.hidden_dim = hidden_dim
        self.common_size = common_size

        # nn.Parameter(...).data.normal_(0, 0.01)
        self.ds_emb = 0.01 * jax.random.normal(k_ds, (ds_nums, hidden_dim),
                                               dtype=jnp.float32)
        self.se_emb = 0.01 * jax.random.normal(k_se, (se_nums, hidden_dim),
                                               dtype=jnp.float32)

        # Xavier-normal init with gain=1.414 for the two Linear layers.
        gain = 1.414
        std1 = gain * (2.0 / (hidden_dim + hidden_dim)) ** 0.5
        std2 = gain * (2.0 / (hidden_dim + common_size)) ** 0.5
        self.w1 = std1 * jax.random.normal(k_w1, (hidden_dim, hidden_dim),
                                           dtype=jnp.float32)
        self.b1 = jnp.zeros((hidden_dim,), jnp.float32)
        self.w2 = std2 * jax.random.normal(k_w2, (common_size, hidden_dim),
                                           dtype=jnp.float32)
        self.b2 = jnp.zeros((common_size,), jnp.float32)

        # Hoisted (computed once): kernel-layout weights — transposed for
        # row-major MXU matmuls and zero-padded to a lane-dense output width.
        c_pad = _round_up(common_size, 128)
        self._w1t = self.w1.T                                   # [H, H]
        self._b1r = self.b1.reshape(1, hidden_dim)              # [1, H]
        self._w2t_pad = jnp.pad(self.w2.T,                       # [H, C_pad]
                                ((0, 0), (0, c_pad - common_size)))
        self._b2r_pad = jnp.pad(self.b2.reshape(1, common_size),  # [1, C_pad]
                                ((0, 0), (0, c_pad - common_size)))

    def forward(self, en_d_embedding, en_p_embedding):
        dg_common, pt_common, ds_common, se_common = fused_mlp_pallas(
            (en_d_embedding, en_p_embedding, self.ds_emb, self.se_emb),
            self._w1t, self._b1r, self._w2t_pad, self._b2r_pad,
            common_size=self.common_size)
        # TODO(synk): helper.comput_distance_loss is an external, undefined
        # helper (not part of this module); the common embeddings it consumes
        # are returned instead of the scalar loss.
        return dg_common, pt_common, ds_common, se_common


def _mlp_ref(x, w1, b1, w2, b2):
    h = x @ w1.T + b1
    h = jnp.where(h > 0, h, jnp.exp(jnp.minimum(h, 0.0)) - 1.0)
    return h @ w2.T + b2


if __name__ == "__main__":
    hidden_dim = 32
    common_size = 16
    dg_nums, pt_nums, ds_nums, se_nums = 8, 8, 8, 8

    key = jax.random.PRNGKey(0)
    k_mod, k_d, k_p = jax.random.split(key, 3)

    mapping = MappingPallas(hidden_dim, common_size, ds_nums, se_nums, k_mod)

    en_d_embedding = jax.random.normal(k_d, (dg_nums, hidden_dim), jnp.float32)
    en_p_embedding = jax.random.normal(k_p, (pt_nums, hidden_dim), jnp.float32)

    outs = mapping.forward(en_d_embedding, en_p_embedding)
    outs = jax.block_until_ready(outs)

    # Correctness check against a pure-JAX reference of the same MLP.
    refs = (
        _mlp_ref(en_d_embedding, mapping.w1, mapping.b1, mapping.w2, mapping.b2),
        _mlp_ref(en_p_embedding, mapping.w1, mapping.b1, mapping.w2, mapping.b2),
        _mlp_ref(mapping.ds_emb, mapping.w1, mapping.b1, mapping.w2, mapping.b2),
        _mlp_ref(mapping.se_emb, mapping.w1, mapping.b1, mapping.w2, mapping.b2),
    )
    for got, want in zip(outs, refs):
        assert got.shape == want.shape, (got.shape, want.shape)
        assert jnp.max(jnp.abs(got - want)) < 1e-4

    print("KERNEL_OK")
</pallas_src>

<mosaic_0001>
module attributes {stable_mosaic.version = 11 : i64} {
  func.func @_mlp_kernel(%arg0: i32, %arg1: memref<32x32xf32, #tpu.memory_space<vmem>>, %arg2: memref<32x32xf32, #tpu.memory_space<vmem>>, %arg3: memref<1x32xf32, #tpu.memory_space<vmem>>, %arg4: memref<32x128xf32, #tpu.memory_space<vmem>>, %arg5: memref<1x128xf32, #tpu.memory_space<vmem>>, %arg6: memref<32x128xf32, #tpu.memory_space<vmem>>) attributes {dimension_semantics = [#tpu.dimension_semantics<parallel>], iteration_bounds = array<i64: 1>, scalar_prefetch = 0 : i64, scratch_operands = 0 : i64, tpu.core_type = #tpu.core_type<tc>, window_params = [{transform_indices = @transform_0, window_bounds = array<i64: 32, 32>}, {pipeline_mode = #tpu.pipeline_mode<synchronous>, transform_indices = @transform_1, window_bounds = array<i64: 32, 32>}, {pipeline_mode = #tpu.pipeline_mode<synchronous>, transform_indices = @transform_2, window_bounds = array<i64: 1, 32>}, {pipeline_mode = #tpu.pipeline_mode<synchronous>, transform_indices = @transform_3, window_bounds = array<i64: 32, 128>}, {pipeline_mode = #tpu.pipeline_mode<synchronous>, transform_indices = @transform_4, window_bounds = array<i64: 1, 128>}, {transform_indices = @transform_5, window_bounds = array<i64: 32, 128>}]} {
    %c0 = arith.constant 0 : index
    %c0_0 = arith.constant 0 : index
    %0 = vector.load %arg1[%c0, %c0_0] : memref<32x32xf32, #tpu.memory_space<vmem>>, vector<32x32xf32>
    %c0_1 = arith.constant 0 : index
    %c0_2 = arith.constant 0 : index
    %1 = vector.load %arg2[%c0_1, %c0_2] : memref<32x32xf32, #tpu.memory_space<vmem>>, vector<32x32xf32>
    %cst = arith.constant dense<0.000000e+00> : vector<32x32xf32>
    %2 = tpu.matmul %0, %1, %cst {dimension_numbers = #tpu.dot_dimension_numbers<[1], [0], [0], [1], [0, 0, 1, 1], [], []>} : vector<32x32xf32>, vector<32x32xf32>, vector<32x32xf32> -> vector<32x32xf32>
    %c0_3 = arith.constant 0 : index
    %c0_4 = arith.constant 0 : index
    %3 = vector.load %arg3[%c0_3, %c0_4] : memref<1x32xf32, #tpu.memory_space<vmem>>, vector<1x32xf32>
    %4 = vector.broadcast %3 : vector<1x32xf32> to vector<32x32xf32>
    %5 = arith.addf %2, %4 : vector<32x32xf32>
    %cst_5 = arith.constant 0.000000e+00 : f32
    %6 = vector.broadcast %cst_5 : f32 to vector<32x32xf32>
    %7 = arith.cmpf ogt, %5, %6 : vector<32x32xf32>
    %cst_6 = arith.constant 0.000000e+00 : f32
    %8 = vector.broadcast %cst_6 : f32 to vector<32x32xf32>
    %9 = arith.minimumf %5, %8 : vector<32x32xf32>
    %10 = math.exp %9 : vector<32x32xf32>
    %cst_7 = arith.constant 1.000000e+00 : f32
    %11 = vector.broadcast %cst_7 : f32 to vector<32x32xf32>
    %12 = arith.subf %10, %11 : vector<32x32xf32>
    %13 = arith.select %7, %5, %12 : vector<32x32xi1>, vector<32x32xf32>
    %c0_8 = arith.constant 0 : index
    %c0_9 = arith.constant 0 : index
    %14 = vector.load %arg4[%c0_8, %c0_9] : memref<32x128xf32, #tpu.memory_space<vmem>>, vector<32x128xf32>
    %cst_10 = arith.constant dense<0.000000e+00> : vector<32x128xf32>
    %15 = tpu.matmul %13, %14, %cst_10 {dimension_numbers = #tpu.dot_dimension_numbers<[1], [0], [0], [1], [0, 0, 1, 1], [], []>} : vector<32x32xf32>, vector<32x128xf32>, vector<32x128xf32> -> vector<32x128xf32>
    %c0_11 = arith.constant 0 : index
    %c0_12 = arith.constant 0 : index
    %16 = vector.load %arg5[%c0_11, %c0_12] : memref<1x128xf32, #tpu.memory_space<vmem>>, vector<1x128xf32>
    %17 = vector.broadcast %16 : vector<1x128xf32> to vector<32x128xf32>
    %18 = arith.addf %15, %17 : vector<32x128xf32>
    %c0_13 = arith.constant 0 : index
    %c0_14 = arith.constant 0 : index
    %19 = vector.load %arg6[%c0_13, %c0_14] : memref<32x128xf32, #tpu.memory_space<vmem>>, vector<32x128xf32>
    tpu.vector_store %arg6[%c0_13, %c0_14], %18 {strides = array<i32>} : memref<32x128xf32, #tpu.memory_space<vmem>>, vector<32x128xf32>,
    return
  }
  func.func @transform_0(%arg0: i32) -> (i32, i32) {
    %c0_i32 = arith.constant 0 : i32
    %c0_i32_0 = arith.constant 0 : i32
    return %arg0, %c0_i32 : i32, i32
  }
  func.func @transform_1(%arg0: i32) -> (i32, i32) {
    %c0_i32 = arith.constant 0 : i32
    %c0_i32_0 = arith.constant 0 : i32
    %c0_i32_1 = arith.constant 0 : i32
    return %c0_i32, %c0_i32_0 : i32, i32
  }
  func.func @transform_2(%arg0: i32) -> (i32, i32) {
    %c0_i32 = arith.constant 0 : i32
    %c0_i32_0 = arith.constant 0 : i32
    %c0_i32_1 = arith.constant 0 : i32
    return %c0_i32, %c0_i32_0 : i32, i32
  }
  func.func @transform_3(%arg0: i32) -> (i32, i32) {
    %c0_i32 = arith.constant 0 : i32
    %c0_i32_0 = arith.constant 0 : i32
    %c0_i32_1 = arith.constant 0 : i32
    return %c0_i32, %c0_i32_0 : i32, i32
  }
  func.func @transform_4(%arg0: i32) -> (i32, i32) {
    %c0_i32 = arith.constant 0 : i32
    %c0_i32_0 = arith.constant 0 : i32
    %c0_i32_1 = arith.constant 0 : i32
    return %c0_i32, %c0_i32_0 : i32, i32
  }
  func.func @transform_5(%arg0: i32) -> (i32, i32) {
    %c0_i32 = arith.constant 0 : i32
    %c0_i32_0 = arith.constant 0 : i32
    return %arg0, %c0_i32 : i32, i32
  }
}

</mosaic_0001>

<llo_original>
// kernel: fused_mlp_pallas.1
$region0: #{fused_mlp_pallas.1}
  #allocation0 [shape = 'u32[]', space=smem, size = 0x4, offset = 0x4, fixed_abs, tag = 'smem constant byte address 0x4 - core index']
  #allocation1 [shape = 'u32[72,128]{1,0:T(1,128)}', space=vmem, size = 0x9000, scoped, tag = 'internal scratch']
  %s0 = inlined_call_operand.vmem [shape: f32[32,32], index: 0, kind: input, shape index: {}]
  %s1 = inlined_call_operand.vmem [shape: f32[32,32], index: 1, kind: input, shape index: {}]
  %s2 = inlined_call_operand.vmem [shape: f32[1,32], index: 2, kind: input, shape index: {}]
  %s3 = inlined_call_operand.vmem [shape: f32[32,128], index: 3, kind: input, shape index: {}]
  %s4 = inlined_call_operand.vmem [shape: f32[1,128], index: 4, kind: input, shape index: {}]
  %s5 = inlined_call_operand.vmem [shape: f32[32,128], index: 5, kind: output, shape index: {}]
  %s6 = sld [smem:[#allocation0]]
  $region30: #{fused_mlp_pallas.1} parent=0
    _
  %s8 = ssub.s32 1, %s6
  %s9 = scalar_select 0, %s8, %s6
  // Predicated region
  $region2: #{fused_mlp_pallas.1} parent=0 // pred_check
    _
  $region3: #{fused_mlp_pallas.1} parent=0 // pred_check_branch
    %11 = sbr.rel (0) target = $region5
  $region4: #{fused_mlp_pallas.1} parent=0 // pred_region
    _
  $region5: #{fused_mlp_pallas.1} parent=0 // pred_fallthru
    _
  // Predicated region
  $region6: #{fused_mlp_pallas.1} parent=0 // pred_check
    _
  $region7: #{fused_mlp_pallas.1} parent=0 // pred_check_branch
    %13 = sbr.rel (0) target = $region9
  $region8: #{fused_mlp_pallas.1} parent=0 // pred_region
    _
  $region9: #{fused_mlp_pallas.1} parent=0 // pred_fallthru
    _
  // Predicated region
  $region10: #{fused_mlp_pallas.1} parent=0 // pred_check
    _
  $region11: #{fused_mlp_pallas.1} parent=0 // pred_check_branch
    %15 = sbr.rel (0) target = $region13
  $region12: #{fused_mlp_pallas.1} parent=0 // pred_region
    _
  $region13: #{fused_mlp_pallas.1} parent=0 // pred_fallthru
    _
  // Predicated region
  $region14: #{fused_mlp_pallas.1} parent=0 // pred_check
    _
  $region15: #{fused_mlp_pallas.1} parent=0 // pred_check_branch
    %17 = sbr.rel (0) target = $region17
  $region16: #{fused_mlp_pallas.1} parent=0 // pred_region
    _
  $region17: #{fused_mlp_pallas.1} parent=0 // pred_fallthru
    _
  // Predicated region
  $region18: #{fused_mlp_pallas.1} parent=0 // pred_check
    _
  $region19: #{fused_mlp_pallas.1} parent=0 // pred_check_branch
    %19 = sbr.rel (0) target = $region21
  $region20: #{fused_mlp_pallas.1} parent=0 // pred_region
    _
  $region21: #{fused_mlp_pallas.1} parent=0 // pred_fallthru
    _
  %v20 = vld [vmem:[%s0] sm:$0xff]
  %v21 = vld [vmem:[%s0 + $0x8] sm:$0xff]
  %v22 = vld [vmem:[%s0 + $0x10] sm:$0xff]
  %v23 = vld [vmem:[%s0 + $0x18] sm:$0xff]
  %v24 = vld [vmem:[%s1] sm:$0xff]
  %v25 = vld [vmem:[%s1 + $0x8] sm:$0xff]
  %v26 = vld [vmem:[%s1 + $0x10] sm:$0xff]
  %v27 = vld [vmem:[%s1 + $0x18] sm:$0xff]
  %v28 = vld [vmem:[%s2] sm:$0x1]
  %v30 = vperm.slane %v28, 0
  %vm32 = vcmask 261120
  %v34 = vsel %vm32, %v20, 0
  %v37 = vsel %vm32, %v21, 0
  %v40 = vsel %vm32, %v22, 0
  %v43 = vsel %vm32, %v23, 0
  %45 = vmatpush.msra.mxu0 0.0
  %46 = vmatpush.msra.mxu0 0.0
  %47 = vmatpush.msra.mxu0 0.0
  %48 = vmatpush.msra.mxu0 0.0
  %49 = vmatpush.msra.mxu0 0.0
  %50 = vmatpush.msra.mxu0 0.0
  %51 = vmatpush.msra.mxu0 0.0
  %52 = vmatpush.msra.mxu0 0.0
  %53 = vmatpush.msra.mxu0 0.0
  %54 = vmatpush.msra.mxu0 0.0
  %55 = vmatpush.msra.mxu0 0.0
  %56 = vmatpush.msra.mxu0 0.0
  %57 = vmatpush.msra.mxu0 %v27
  %58 = vmatpush.msra.mxu0 %v26
  %59 = vmatpush.msra.mxu0 %v25
  %60 = vmatpush.msra.mxu0 %v24
  %61 = vmatmul.f32.gmra.mxu0 %v34
  %v62 = vpop.f32.mrf.mxu0
  %v63 = vadd.f32 %v30, %v62
  %64 = vmatmul.f32.gmra.mxu0 %v37
  %v65 = vpop.f32.mrf.mxu0
  %v66 = vadd.f32 %v30, %v65
  %67 = vmatmul.f32.gmra.mxu0 %v40
  %v68 = vpop.f32.mrf.mxu0
  %v69 = vadd.f32 %v30, %v68
  %70 = vmatmul.f32.gmra.mxu0 %v43
  %v71 = vpop.f32.mrf.mxu0
  %v72 = vadd.f32 %v30, %v71
  %73 = vdwg.mxu0
  %vm74 = vcmp.gt.f32.partialorder %v63, 0.0
  %vm75 = vcmp.gt.f32.partialorder %v66, 0.0
  %vm76 = vcmp.gt.f32.partialorder %v69, 0.0
  %vm77 = vcmp.gt.f32.partialorder %v72, 0.0
  %v78 = vmin.f32 %v63, 0.0
  %v79 = vmin.f32 %v66, 0.0
  %v80 = vmin.f32 %v69, 0.0
  %v81 = vmin.f32 %v72, 0.0
  %v82 = vmul.f32 %v78, 1.442695
  %v83 = vpow.pop %v82
  %v84 = vmul.f32 %v79, 1.442695
  %v85 = vpow.pop %v84
  %v86 = vmul.f32 %v80, 1.442695
  %v87 = vpow.pop %v86
  %v88 = vmul.f32 %v81, 1.442695
  %v89 = vpow.pop %v88
  %v90 = vsub.f32 %v83, 1.0
  %v91 = vsub.f32 %v85, 1.0
  %v92 = vsub.f32 %v87, 1.0
  %v93 = vsub.f32 %v89, 1.0
  %v94 = vsel %vm74, %v63, %v90
  %v95 = vsel %vm75, %v66, %v91
  %v96 = vsel %vm76, %v69, %v92
  %v97 = vsel %vm77, %v72, %v93
  %v98 = vld [vmem:[%s3] sm:$0xff]
  %v99 = vld [vmem:[%s3 + $0x8] sm:$0xff]
  %v100 = vld [vmem:[%s3 + $0x10] sm:$0xff]
  %v101 = vld [vmem:[%s3 + $0x18] sm:$0xff]
  %v102 = vld [vmem:[%s4] sm:$0x1]
  %v104 = vperm.slane %v102, 0
  %v107 = vsel %vm32, %v94, 0
  %v110 = vsel %vm32, %v95, 0
  %v113 = vsel %vm32, %v96, 0
  %v116 = vsel %vm32, %v97, 0
  %118 = vmatpush.msra.mxu0 0.0
  %119 = vmatpush.msra.mxu0 0.0
  %120 = vmatpush.msra.mxu0 0.0
  %121 = vmatpush.msra.mxu0 0.0
  %122 = vmatpush.msra.mxu0 0.0
  %123 = vmatpush.msra.mxu0 0.0
  %124 = vmatpush.msra.mxu0 0.0
  %125 = vmatpush.msra.mxu0 0.0
  %126 = vmatpush.msra.mxu0 0.0
  %127 = vmatpush.msra.mxu0 0.0
  %128 = vmatpush.msra.mxu0 0.0
  %129 = vmatpush.msra.mxu0 0.0
  %130 = vmatpush.msra.mxu0 %v101
  %131 = vmatpush.msra.mxu0 %v100
  %132 = vmatpush.msra.mxu0 %v99
  %133 = vmatpush.msra.mxu0 %v98
  %134 = vmatmul.f32.gmra.mxu0 %v107
  %v135 = vpop.f32.mrf.mxu0
  %v136 = vadd.f32 %v104, %v135
  %137 = vmatmul.f32.gmra.mxu0 %v110
  %v138 = vpop.f32.mrf.mxu0
  %v139 = vadd.f32 %v104, %v138
  %140 = vmatmul.f32.gmra.mxu0 %v113
  %v141 = vpop.f32.mrf.mxu0
  %v142 = vadd.f32 %v104, %v141
  %143 = vmatmul.f32.gmra.mxu0 %v116
  %v144 = vpop.f32.mrf.mxu0
  %v145 = vadd.f32 %v104, %v144
  %146 = vdwg.mxu0
  %147 = vst [vmem:[%s5] sm:$0xff] %v136
  %148 = vst [vmem:[%s5 + $0x8] sm:$0xff] %v139
  %149 = vst [vmem:[%s5 + $0x10] sm:$0xff] %v142
  %150 = vst [vmem:[%s5 + $0x18] sm:$0xff] %v145
  // Predicated region
  $region22: #{fused_mlp_pallas.1} parent=0 // pred_check
    _
  $region23: #{fused_mlp_pallas.1} parent=0 // pred_check_branch
    %152 = sbr.rel (0) target = $region25
  $region24: #{fused_mlp_pallas.1} parent=0 // pred_region
    _
  $region25: #{fused_mlp_pallas.1} parent=0 // pred_fallthru
    _
  // Predicated region
  $region26: #{fused_mlp_pallas.1} parent=0 // pred_check
    _
  $region27: #{fused_mlp_pallas.1} parent=0 // pred_check_branch
    %154 = sbr.rel (0) target = $region29
  $region28: #{fused_mlp_pallas.1} parent=0 // pred_region
    _
  $region29: #{fused_mlp_pallas.1} parent=0 // pred_fallthru
    _

</llo_original>
